<compile_context>
chip_gen: v6e
topology: v6e:2x2x1
jax: 0.10.0
libtpu: 0.0.40
codegen_flags: <defaults>
</compile_context>

<pallas_src>
import jax
import jax.numpy as jnp
import numpy as np
from jax import lax
from jax.experimental import pallas as pl
from jax.experimental.pallas import tpu as pltpu


def _make_cam_kernel(hw_true, hw_padded):
    """Kernel factory: hw_true / hw_padded are static (Python) ints."""
    padded = hw_padded != hw_true
    inv_hw = 1.0 / float(hw_true)

    def cam_kernel(x_ref, w1_ref, b1_ref, w2_ref, b2_ref, out_ref):
        # x_ref / out_ref block: (Bt, C, HWp) -- channels on sublanes,
        # flattened (padded) spatial axis on lanes.
        x = x_ref[...]                                            # native dtype

        # ---- global spatial pooling (adaptive_{max,avg}_pool2d -> 1x1) ----
        if padded:
            lane = lax.broadcasted_iota(jnp.int32, x.shape, 2)
            x_for_max = jnp.where(lane < hw_true, x,
                                  jnp.asarray(-jnp.inf, x.dtype))
        else:
            x_for_max = x
        mx = jnp.max(x_for_max, axis=-1, keepdims=True).astype(jnp.float32)  # (Bt,C,1)
        sm = jnp.sum(x, axis=-1, keepdims=True, dtype=jnp.float32)            # zero pad safe
        av = sm * inv_hw                                                       # (Bt,C,1)
        pooled = jnp.concatenate([mx, av], axis=-1)                            # (Bt,C,2)

        # ---- shared 2-layer MLP (PyTorch Linear orientation: y = W @ v + b) ----
        h = jnp.einsum("oc,bci->boi", w1_ref[...], pooled,
                       preferred_element_type=jnp.float32) + b1_ref[...]       # (Bt,Cr,2)
        h = jnp.maximum(h, 0.0)                                                # ReLU
        z = jnp.einsum("oc,bci->boi", w2_ref[...], h,
                       preferred_element_type=jnp.float32) + b2_ref[...]       # (Bt,C,2)

        # sigmoid(mlp(max) + mlp(avg)) -> per-channel attention, broadcast over lanes.
        att = jax.nn.sigmoid(z[..., 0:1] + z[..., 1:2])                        # (Bt,C,1)
        out_ref[...] = (x * att.astype(x.dtype)).astype(out_ref.dtype)

    return cam_kernel


def cam_pallas(x_nchw, w1, b1, w2, b2):
    """x_nchw: (B, C, H, W); w1: (Cr, C); b1: (Cr, 1); w2: (C, Cr); b2: (C, 1)."""
    B, C, H, W = x_nchw.shape
    Cr = w1.shape[0]
    HW = H * W
    HWp = ((HW + 127) // 128) * 128              # lane-dense last dim
    itemsize = jnp.dtype(x_nchw.dtype).itemsize

    x2 = x_nchw.reshape(B, C, HW)                # contiguous collapse
    if HWp != HW:
        x2 = jnp.pad(x2, ((0, 0), (0, 0), (0, HWp - HW)))

    # --- how many batch elements to fuse per grid step ---
    frame_bytes = C * HWp * itemsize
    target_block_bytes = 2 << 20                 # ~2 MiB input block target
    Bt = max(1, min(B, target_block_bytes // max(1, frame_bytes)))
    while B % Bt:
        Bt -= 1
    if B // Bt < 2 and Bt > 1:                   # keep >=2 parallel steps (v7x megacore)
        Bt = max(1, B // 2)
        while B % Bt:
            Bt -= 1
    num_steps = B // Bt

    block_bytes = Bt * frame_bytes
    weight_bytes = sum(int(np.prod(a.shape)) * jnp.dtype(a.dtype).itemsize
                       for a in (w1, b1, w2, b2))

    # Large-frame fallback (v7x has only 64 MiB VMEM): drop to single buffering
    # instead of failing with double-buffered whole-frame blocks.
    big_frame = (4 * block_bytes + weight_bytes) > (48 << 20)
    # TODO(synk): for frames exceeding even single-buffered VMEM, add a two-phase
    # variant (tiled pooling+MLP, then tiled scale) accepting ~1.5x HBM traffic.

    def io_spec():
        if big_frame:
            return pl.BlockSpec((Bt, C, HWp), lambda b: (b, 0, 0),
                                pipeline_mode=pl.Buffered(1))
        return pl.BlockSpec((Bt, C, HWp), lambda b: (b, 0, 0))

    vmem_limit = int(min(max(4 * block_bytes + weight_bytes + (4 << 20), 32 << 20),
                         128 << 20))

    cost = pl.CostEstimate(
        flops=int(4 * B * C * HW + 8 * B * C * Cr),
        transcendentals=int(B * C),
        bytes_accessed=int(2 * B * C * HW * itemsize + weight_bytes),
    )

    out = pl.pallas_call(
        _make_cam_kernel(HW, HWp),
        out_shape=jax.ShapeDtypeStruct((B, C, HWp), x_nchw.dtype),
        grid=(num_steps,),
        in_specs=[
            io_spec(),
            pl.BlockSpec((Cr, C), lambda b: (0, 0)),
            pl.BlockSpec((Cr, 1), lambda b: (0, 0)),
            pl.BlockSpec((C, Cr), lambda b: (0, 0)),
            pl.BlockSpec((C, 1), lambda b: (0, 0)),
        ],
        out_specs=io_spec(),
        compiler_params=pltpu.CompilerParams(
            dimension_semantics=("parallel",),
            vmem_limit_bytes=vmem_limit,
        ),
        cost_estimate=cost,
    )(x2, w1, b1, w2, b2)

    if HWp != HW:
        out = out[..., :HW]
    return out.reshape(B, C, H, W)


def cam_ref(x, w1, b1, w2, b2):
    """Pure-JAX reference matching the PyTorch CAM semantics (NCHW)."""
    mx = jnp.max(x, axis=(2, 3))                 # (B, C)
    av = jnp.mean(x, axis=(2, 3))                # (B, C)

    def mlp(v):                                  # PyTorch Linear: y = v @ W.T + b
        h = jnp.maximum(v @ w1.T + b1[:, 0], 0.0)
        return h @ w2.T + b2[:, 0]

    att = jax.nn.sigmoid(mlp(mx) + mlp(av))      # (B, C)
    return x * att[:, :, None, None]


def _run_case(B, C, H, W, r, seed):
    Cr = C // r
    key = jax.random.PRNGKey(seed)
    kx, k1, k2, k3, k4 = jax.random.split(key, 5)
    x = jax.random.normal(kx, (B, C, H, W), jnp.float32)
    w1 = jax.random.normal(k1, (Cr, C), jnp.float32) * 0.5
    b1 = jax.random.normal(k2, (Cr, 1), jnp.float32) * 0.1
    w2 = jax.random.normal(k3, (C, Cr), jnp.float32) * 0.5
    b2 = jax.random.normal(k4, (C, 1), jnp.float32) * 0.1

    out = jax.block_until_ready(cam_pallas(x, w1, b1, w2, b2))
    ref = cam_ref(x, w1, b1, w2, b2)
    err = float(jnp.max(jnp.abs(out - ref)))
    assert np.allclose(np.asarray(out), np.asarray(ref), atol=1e-4, rtol=1e-4), err


if __name__ == "__main__":
    # Small shape consistent with the module (HW already a multiple of 128).
    _run_case(B=2, C=4, H=16, W=16, r=2, seed=0)
    # Non-128-multiple spatial size (14x14 -> padded to 256 lanes) to exercise
    # the masked-max / true-HW-mean padding path.
    _run_case(B=2, C=8, H=14, W=14, r=2, seed=1)
    print("KERNEL_OK")
</pallas_src>

<mosaic_0001>
module attributes {stable_mosaic.version = 11 : i64} {
  func.func @cam_kernel(%arg0: i32, %arg1: memref<1x4x256xf32, #tpu.memory_space<vmem>>, %arg2: memref<2x4xf32, #tpu.memory_space<vmem>>, %arg3: memref<2x1xf32, #tpu.memory_space<vmem>>, %arg4: memref<4x2xf32, #tpu.memory_space<vmem>>, %arg5: memref<4x1xf32, #tpu.memory_space<vmem>>, %arg6: memref<1x4x256xf32, #tpu.memory_space<vmem>>) attributes {dimension_semantics = [#tpu.dimension_semantics<parallel>], iteration_bounds = array<i64: 2>, scalar_prefetch = 0 : i64, scratch_operands = 0 : i64, tpu.core_type = #tpu.core_type<tc>, window_params = [{transform_indices = @transform_0, window_bounds = array<i64: 1, 4, 256>}, {pipeline_mode = #tpu.pipeline_mode<synchronous>, transform_indices = @transform_1, window_bounds = array<i64: 2, 4>}, {pipeline_mode = #tpu.pipeline_mode<synchronous>, transform_indices = @transform_2, window_bounds = array<i64: 2, 1>}, {pipeline_mode = #tpu.pipeline_mode<synchronous>, transform_indices = @transform_3, window_bounds = array<i64: 4, 2>}, {pipeline_mode = #tpu.pipeline_mode<synchronous>, transform_indices = @transform_4, window_bounds = array<i64: 4, 1>}, {transform_indices = @transform_5, window_bounds = array<i64: 1, 4, 256>}]} {
    %c0 = arith.constant 0 : index
    %c0_0 = arith.constant 0 : index
    %c0_1 = arith.constant 0 : index
    %0 = vector.load %arg1[%c0, %c0_0, %c0_1] : memref<1x4x256xf32, #tpu.memory_space<vmem>>, vector<1x4x256xf32>
    %cst = arith.constant dense<0xFF800000> : vector<1x4xf32>
    %1 = vector.multi_reduction <maximumf>, %0, %cst [2] : vector<1x4x256xf32> to vector<1x4xf32>
    %2 = vector.shape_cast %1 : vector<1x4xf32> to vector<1x4x1xf32>
    %cst_2 = arith.constant dense<0.000000e+00> : vector<1x4xf32>
    %3 = vector.multi_reduction <add>, %0, %cst_2 [2] : vector<1x4x256xf32> to vector<1x4xf32>
    %4 = vector.shape_cast %3 : vector<1x4xf32> to vector<1x4x1xf32>
    %cst_3 = arith.constant 3.906250e-03 : f32
    %5 = vector.broadcast %cst_3 : f32 to vector<1x4x1xf32>
    %6 = arith.mulf %4, %5 : vector<1x4x1xf32>
    %7 = tpu.concatenate %2, %6 in 2 : vector<1x4x1xf32>, vector<1x4x1xf32> -> vector<1x4x2xf32>
    %c0_4 = arith.constant 0 : index
    %c0_5 = arith.constant 0 : index
    %8 = vector.load %arg2[%c0_4, %c0_5] : memref<2x4xf32, #tpu.memory_space<vmem>>, vector<2x4xf32>
    "tpu.trace_start"() <{level = 10 : i32, message = "oc,bci->boi"}> : () -> ()
    %cst_6 = arith.constant dense<0.000000e+00> : vector<1x2x2xf32>
    %9 = tpu.matmul %7, %8, %cst_6 {dimension_numbers = #tpu.dot_dimension_numbers<[1], [1], [0, 2], [0], [0, 0, 0, 2, 1, 0], [], []>} : vector<1x4x2xf32>, vector<2x4xf32>, vector<1x2x2xf32> -> vector<1x2x2xf32>
    %10 = tpu.transpose %9, [0, 2, 1] : vector<1x2x2xf32> -> vector<1x2x2xf32>
    "tpu.trace_stop"() : () -> ()
    %c0_7 = arith.constant 0 : index
    %c0_8 = arith.constant 0 : index
    %11 = vector.load %arg3[%c0_7, %c0_8] : memref<2x1xf32, #tpu.memory_space<vmem>>, vector<2x1xf32>
    %12 = vector.shape_cast %11 : vector<2x1xf32> to vector<1x2x1xf32>
    %13 = vector.broadcast %12 : vector<1x2x1xf32> to vector<1x2x2xf32>
    %14 = arith.addf %10, %13 : vector<1x2x2xf32>
    %cst_9 = arith.constant 0.000000e+00 : f32
    %15 = vector.broadcast %cst_9 : f32 to vector<1x2x2xf32>
    %16 = arith.maximumf %14, %15 : vector<1x2x2xf32>
    %c0_10 = arith.constant 0 : index
    %c0_11 = arith.constant 0 : index
    %17 = vector.load %arg4[%c0_10, %c0_11] : memref<4x2xf32, #tpu.memory_space<vmem>>, vector<4x2xf32>
    "tpu.trace_start"() <{level = 10 : i32, message = "oc,bci->boi"}> : () -> ()
    %cst_12 = arith.constant dense<0.000000e+00> : vector<1x2x4xf32>
    %18 = tpu.matmul %16, %17, %cst_12 {dimension_numbers = #tpu.dot_dimension_numbers<[1], [1], [0, 2], [0], [0, 0, 0, 2, 1, 0], [], []>} : vector<1x2x2xf32>, vector<4x2xf32>, vector<1x2x4xf32> -> vector<1x2x4xf32>
    %19 = tpu.transpose %18, [0, 2, 1] : vector<1x2x4xf32> -> vector<1x4x2xf32>
    "tpu.trace_stop"() : () -> ()
    %c0_13 = arith.constant 0 : index
    %c0_14 = arith.constant 0 : index
    %20 = vector.load %arg5[%c0_13, %c0_14] : memref<4x1xf32, #tpu.memory_space<vmem>>, vector<4x1xf32>
    %21 = vector.shape_cast %20 : vector<4x1xf32> to vector<1x4x1xf32>
    %22 = vector.broadcast %21 : vector<1x4x1xf32> to vector<1x4x2xf32>
    %23 = arith.addf %19, %22 : vector<1x4x2xf32>
    %24 = vector.extract_strided_slice %23 {offsets = [0, 0, 0], sizes = [1, 4, 1], strides = [1, 1, 1]} : vector<1x4x2xf32> to vector<1x4x1xf32>
    %25 = vector.extract_strided_slice %23 {offsets = [0, 0, 1], sizes = [1, 4, 1], strides = [1, 1, 1]} : vector<1x4x2xf32> to vector<1x4x1xf32>
    %26 = arith.addf %24, %25 : vector<1x4x1xf32>
    %27 = arith.negf %26 : vector<1x4x1xf32>
    %28 = math.exp %27 : vector<1x4x1xf32>
    %cst_15 = arith.constant 1.000000e+00 : f32
    %29 = vector.broadcast %cst_15 : f32 to vector<1x4x1xf32>
    %30 = arith.addf %29, %28 : vector<1x4x1xf32>
    %31 = arith.divf %29, %30 : vector<1x4x1xf32>
    %32 = vector.broadcast %31 : vector<1x4x1xf32> to vector<1x4x256xf32>
    %33 = arith.mulf %0, %32 : vector<1x4x256xf32>
    %c0_16 = arith.constant 0 : index
    %c0_17 = arith.constant 0 : index
    %c0_18 = arith.constant 0 : index
    %34 = vector.load %arg6[%c0_16, %c0_17, %c0_18] : memref<1x4x256xf32, #tpu.memory_space<vmem>>, vector<1x4x256xf32>
    tpu.vector_store %arg6[%c0_16, %c0_17, %c0_18], %33 {strides = array<i32>} : memref<1x4x256xf32, #tpu.memory_space<vmem>>, vector<1x4x256xf32>,
    return
  }
  func.func @transform_0(%arg0: i32) -> (i32, i32, i32) {
    %c0_i32 = arith.constant 0 : i32
    %c0_i32_0 = arith.constant 0 : i32
    %c0_i32_1 = arith.constant 0 : i32
    return %arg0, %c0_i32, %c0_i32_0 : i32, i32, i32
  }
  func.func @transform_1(%arg0: i32) -> (i32, i32) {
    %c0_i32 = arith.constant 0 : i32
    %c0_i32_0 = arith.constant 0 : i32
    %c0_i32_1 = arith.constant 0 : i32
    return %c0_i32, %c0_i32_0 : i32, i32
  }
  func.func @transform_2(%arg0: i32) -> (i32, i32) {
    %c0_i32 = arith.constant 0 : i32
    %c0_i32_0 = arith.constant 0 : i32
    %c0_i32_1 = arith.constant 0 : i32
    return %c0_i32, %c0_i32_0 : i32, i32
  }
  func.func @transform_3(%arg0: i32) -> (i32, i32) {
    %c0_i32 = arith.constant 0 : i32
    %c0_i32_0 = arith.constant 0 : i32
    %c0_i32_1 = arith.constant 0 : i32
    return %c0_i32, %c0_i32_0 : i32, i32
  }
  func.func @transform_4(%arg0: i32) -> (i32, i32) {
    %c0_i32 = arith.constant 0 : i32
    %c0_i32_0 = arith.constant 0 : i32
    %c0_i32_1 = arith.constant 0 : i32
    return %c0_i32, %c0_i32_0 : i32, i32
  }
  func.func @transform_5(%arg0: i32) -> (i32, i32, i32) {
    %c0_i32 = arith.constant 0 : i32
    %c0_i32_0 = arith.constant 0 : i32
    %c0_i32_1 = arith.constant 0 : i32
    return %arg0, %c0_i32, %c0_i32_0 : i32, i32, i32
  }
}

</mosaic_0001>

<llo_original>
// kernel: tpu_custom_call.1
$region0: #{tpu_custom_call.1}
  #allocation0 [shape = 'u32[]', space=smem, size = 0x4, offset = 0x4, fixed_abs, tag = 'smem constant byte address 0x4 - core index']
  #allocation1 [shape = 'u32[144,128]{1,0:T(1,128)}', space=vmem, size = 0x12000, scoped, tag = 'internal scratch']
  %s0 = inlined_call_operand.hbm [shape: f32[2,4,256], index: 0, kind: input, shape index: {}]
  %s1 = inlined_call_operand.vmem [shape: f32[2,4], index: 1, kind: input, shape index: {}]
  %s2 = inlined_call_operand.vmem [shape: f32[2,1], index: 2, kind: input, shape index: {}]
  %s3 = inlined_call_operand.vmem [shape: f32[4,2], index: 3, kind: input, shape index: {}]
  %s4 = inlined_call_operand.vmem [shape: f32[4,1], index: 4, kind: input, shape index: {}]
  %s5 = inlined_call_operand.hbm [shape: f32[2,4,256], index: 5, kind: output, shape index: {}]
  %s6 = sld [smem:[#allocation0]]
  $region57: #{tpu_custom_call.1} parent=0
    _
  %s8 = ssub.s32 1, %s6
  %s9 = scalar_select 0, %s8, %s6
  $region1: #{tpu_custom_call.1} parent=0
    #allocation2 [shape = 'u8[8192]{0}', space=vmem, size = 0x2000, scoped, tag = 'input window, operand 0']
    #allocation3 [shape = 's32[2]{0}', space=sflag, size = 0x8, scoped, tag = 'scoped memory for tpu_custom_call.1']
    #allocation4 [shape = 's32[2]{0}', space=sflag, size = 0x8, scoped, tag = 'scoped memory for tpu_custom_call.1']
    #allocation5 [shape = 'u8[8192]{0}', space=vmem, size = 0x2000, scoped, tag = 'output window, operand 0']
    %10 = vsyncpa [#allocation3], 0
    %s11 = scalar_lea.sflag [#allocation3], 1
    %12 = vsyncpa %s11, 0
    %13 = vsyncpa [#allocation4], 0
    %s14 = scalar_lea.sflag [#allocation4], 1
    %15 = vsyncpa %s14, 0
    loop: start=0, step=1, limit=4
    $region2: #{tpu_custom_call.1} parent=1 // loop_pre_header
      _
    $region3: #{tpu_custom_call.1} parent=1 // loop_header
      %s17 = sphi 0, %s21
      %p18 = scmp.ge.s32.totalorder %s17, 4
      %s27 = sphi 0, %s29
      %s30 = sphi 0, %s27
      %s31 = sphi 0, %s30
      %s47 = sphi 0, %s31
      %s51 = sphi 0, %s51
      %s53 = sphi 0, %s51
      %s54 = sphi 0, %s53
      %s68 = sphi 0, %s54
      %s72 = sphi 0, %s72
      %s74 = sphi 0, %s72
      %s75 = sphi 0, %s74
      %s89 = sphi 0, %s75
      %s93 = sphi 0, %s93
      %s95 = sphi 0, %s93
      %s96 = sphi 0, %s95
      %s110 = sphi 0, %s96
      %s114 = sphi 0, %s114
      %s116 = sphi 0, %s114
      %s117 = sphi 0, %s116
      %s131 = sphi 0, %s117
      %s137 = sphi 0, %s139
      %s140 = sphi 0, %s137
      %s141 = sphi 0, %s140
      %s157 = sphi 0, %s141
    $region4: #{tpu_custom_call.1} parent=1 // loop_header_branch
      %20 = sbr.rel (%p18) target = $region8
    $region5: #{tpu_custom_call.1} parent=1 // loop_body
      %s22 = ssub.s32 %s17, 1
      %s23 = ssub.s32 %s17, 2
      %s24 = sadd.s32 %s17, 1
      %s25 = ssub.s32 %s17, %s24
      %p26 = scmp.eq.s32.totalorder %s25, 0
      %s28 = sadd.s32 %s27, 1
      %s29 = scalar_select %p26, %s27, %s28
      %p32 = pneg %p26
      %p33 = scmp.eq.s32.totalorder %s17, 1
      %p34 = por %p32, %p33
      %p35 = scmp.ne.s32.totalorder %s27, %s30
      %p36 = scmp.eq.s32.totalorder %s17, 0
      %p37 = por %p35, %p36
      %p38 = scmp.ne.s32.totalorder %s27, %s30
      %p39 = scmp.eq.s32.totalorder %s22, 1
      %p40 = por %p38, %p39
      %p41 = scmp.ne.s32.totalorder %s30, %s31
      %p42 = scmp.eq.s32.totalorder %s22, 0
      %p43 = por %p41, %p42
      %p44 = scmp.ne.s32.totalorder %s30, %s31
      %p45 = scmp.eq.s32.totalorder %s23, 1
      %p46 = por %p44, %p45
      %p48 = scmp.ne.s32.totalorder %s31, %s47
      %p49 = scmp.eq.s32.totalorder %s23, 0
      %p50 = por %p48, %p49
      %s52 = sadd.s32 %s51, 1
      %p55 = scmp.eq.s32.totalorder %s17, 1
      %p56 = scmp.ne.s32.totalorder %s51, %s53
      %p57 = scmp.eq.s32.totalorder %s17, 0
      %p58 = por %p56, %p57
      %p59 = scmp.ne.s32.totalorder %s51, %s53
      %p60 = scmp.eq.s32.totalorder %s22, 1
      %p61 = por %p59, %p60
      %p62 = scmp.ne.s32.totalorder %s53, %s54
      %p63 = scmp.eq.s32.totalorder %s22, 0
      %p64 = por %p62, %p63
      %p65 = scmp.ne.s32.totalorder %s53, %s54
      %p66 = scmp.eq.s32.totalorder %s23, 1
      %p67 = por %p65, %p66
      %p69 = scmp.ne.s32.totalorder %s54, %s68
      %p70 = scmp.eq.s32.totalorder %s23, 0
      %p71 = por %p69, %p70
      %s73 = sadd.s32 %s72, 1
      %p76 = scmp.eq.s32.totalorder %s17, 1
      %p77 = scmp.ne.s32.totalorder %s72, %s74
      %p78 = scmp.eq.s32.totalorder %s17, 0
      %p79 = por %p77, %p78
      %p80 = scmp.ne.s32.totalorder %s72, %s74
      %p81 = scmp.eq.s32.totalorder %s22, 1
      %p82 = por %p80, %p81
      %p83 = scmp.ne.s32.totalorder %s74, %s75
      %p84 = scmp.eq.s32.totalorder %s22, 0
      %p85 = por %p83, %p84
      %p86 = scmp.ne.s32.totalorder %s74, %s75
      %p87 = scmp.eq.s32.totalorder %s23, 1
      %p88 = por %p86, %p87
      %p90 = scmp.ne.s32.totalorder %s75, %s89
      %p91 = scmp.eq.s32.totalorder %s23, 0
      %p92 = por %p90, %p91
      %s94 = sadd.s32 %s93, 1
      %p97 = scmp.eq.s32.totalorder %s17, 1
      %p98 = scmp.ne.s32.totalorder %s93, %s95
      %p99 = scmp.eq.s32.totalorder %s17, 0
      %p100 = por %p98, %p99
      %p101 = scmp.ne.s32.totalorder %s93, %s95
      %p102 = scmp.eq.s32.totalorder %s22, 1
      %p103 = por %p101, %p102
      %p104 = scmp.ne.s32.totalorder %s95, %s96
      %p105 = scmp.eq.s32.totalorder %s22, 0
      %p106 = por %p104, %p105
      %p107 = scmp.ne.s32.totalorder %s95, %s96
      %p108 = scmp.eq.s32.totalorder %s23, 1
      %p109 = por %p107, %p108
      %p111 = scmp.ne.s32.totalorder %s96, %s110
      %p112 = scmp.eq.s32.totalorder %s23, 0
      %p113 = por %p111, %p112
      %s115 = sadd.s32 %s114, 1
      %p118 = scmp.eq.s32.totalorder %s17, 1
      %p119 = scmp.ne.s32.totalorder %s114, %s116
      %p120 = scmp.eq.s32.totalorder %s17, 0
      %p121 = por %p119, %p120
      %p122 = scmp.ne.s32.totalorder %s114, %s116
      %p123 = scmp.eq.s32.totalorder %s22, 1
      %p124 = por %p122, %p123
      %p125 = scmp.ne.s32.totalorder %s116, %s117
      %p126 = scmp.eq.s32.totalorder %s22, 0
      %p127 = por %p125, %p126
      %p128 = scmp.ne.s32.totalorder %s116, %s117
      %p129 = scmp.eq.s32.totalorder %s23, 1
      %p130 = por %p128, %p129
      %p132 = scmp.ne.s32.totalorder %s117, %s131
      %p133 = scmp.eq.s32.totalorder %s23, 0
      %p134 = por %p132, %p133
      %s135 = ssub.s32 %s17, %s24
      %p136 = scmp.eq.s32.totalorder %s135, 0
      %s138 = sadd.s32 %s137, 1
      %s139 = scalar_select %p136, %s137, %s138
      %p142 = pneg %p136
      %p143 = scmp.eq.s32.totalorder %s17, 1
      %p144 = por %p142, %p143
      %p145 = scmp.ne.s32.totalorder %s137, %s140
      %p146 = scmp.eq.s32.totalorder %s17, 0
      %p147 = por %p145, %p146
      %p148 = scmp.ne.s32.totalorder %s137, %s140
      %p149 = scmp.eq.s32.totalorder %s22, 1
      %p150 = por %p148, %p149
      %p151 = scmp.ne.s32.totalorder %s140, %s141
      %p152 = scmp.eq.s32.totalorder %s22, 0
      %p153 = por %p151, %p152
      %p154 = scmp.ne.s32.totalorder %s140, %s141
      %p155 = scmp.eq.s32.totalorder %s23, 1
      %p156 = por %p154, %p155
      %p158 = scmp.ne.s32.totalorder %s141, %s157
      %p159 = scmp.eq.s32.totalorder %s23, 0
      %p160 = por %p158, %p159
      %p161 = scmp.le.s32.totalorder 1, %s17
      %p162 = scmp.lt.s32.totalorder %s17, 3
      %p163 = pnand %p161, %p162
      %p164 = pneg %p163
      // Predicated region
      $region9: #{tpu_custom_call.1} parent=5 // pred_check
        _
      $region10: #{tpu_custom_call.1} parent=5 // pred_check_branch
        %166 = sbr.rel (%p163) target = $region12
      $region11: #{tpu_custom_call.1} parent=5 // pred_region
        %s167 = ssub.s32 %s17, 1
        // Predicated region
        $region13: #{tpu_custom_call.1} parent=11 // pred_check
          %p168 = pneg %p64
        $region14: #{tpu_custom_call.1} parent=11 // pred_check_branch
          %170 = sbr.rel (%p168) target = $region16
        $region15: #{tpu_custom_call.1} parent=11 // pred_region
          _
        $region16: #{tpu_custom_call.1} parent=11 // pred_fallthru
          _
        // Predicated region
        $region17: #{tpu_custom_call.1} parent=11 // pred_check
          %p171 = pneg %p85
        $region18: #{tpu_custom_call.1} parent=11 // pred_check_branch
          %173 = sbr.rel (%p171) target = $region20
        $region19: #{tpu_custom_call.1} parent=11 // pred_region
          _
        $region20: #{tpu_custom_call.1} parent=11 // pred_fallthru
          _
        // Predicated region
        $region21: #{tpu_custom_call.1} parent=11 // pred_check
          %p174 = pneg %p106
        $region22: #{tpu_custom_call.1} parent=11 // pred_check_branch
          %176 = sbr.rel (%p174) target = $region24
        $region23: #{tpu_custom_call.1} parent=11 // pred_region
          _
        $region24: #{tpu_custom_call.1} parent=11 // pred_fallthru
          _
        // Predicated region
        $region25: #{tpu_custom_call.1} parent=11 // pred_check
          %p177 = pneg %p127
        $region26: #{tpu_custom_call.1} parent=11 // pred_check_branch
          %179 = sbr.rel (%p177) target = $region28
        $region27: #{tpu_custom_call.1} parent=11 // pred_region
          _
        $region28: #{tpu_custom_call.1} parent=11 // pred_fallthru
          _
      $region12: #{tpu_custom_call.1} parent=5 // pred_fallthru
        _
      %p180 = scmp.lt.s32.totalorder %s17, 2
      // Predicated region
      $region29: #{tpu_custom_call.1} parent=5 // pred_check
        %p181 = pneg %p180
      $region30: #{tpu_custom_call.1} parent=5 // pred_check_branch
        %183 = sbr.rel (%p181) target = $region32
      $region31: #{tpu_custom_call.1} parent=5 // pred_region
        // Predicated region
        $region33: #{tpu_custom_call.1} parent=31 // pred_check
          %p184 = pneg %p37
        $region34: #{tpu_custom_call.1} parent=31 // pred_check_branch
          %186 = sbr.rel (%p184) target = $region36
        $region35: #{tpu_custom_call.1} parent=31 // pred_region
          %s187 = sand.u32 %s27, 1
          %s188 = scalar_lea.sflag [#allocation3], %s187
          %s189 = sand.u32 %s27, 1
          %s190 = smul.addr %s189, 8
          %s191 = scalar_lea.vmem [#allocation2], %s190
          %s193 = ssub.s32 128, 128
          %194 = vsyncadd %s188, %s193
          %s195 = smul.addr %s17, 2
          %s196 = smul.addr %s195, 64
          %s197 = scalar_lea.hbm %s0, %s196
          %s199 = sshll.u32 %s191, 4
          %s200 = int_to_ptr.vmem [resolvable:$true] %s199
          %202 = dma.hbm_to_vmem [thread:$0]  %s197, 128, %s200, %s188
        $region36: #{tpu_custom_call.1} parent=31 // pred_fallthru
          _
      $region32: #{tpu_custom_call.1} parent=5 // pred_fallthru
        _
      %p203 = scmp.le.s32.totalorder 1, %s17
      %p204 = scmp.lt.s32.totalorder %s17, 3
      %p205 = pnand %p203, %p204
      %p206 = pneg %p205
      // Predicated region
      $region37: #{tpu_custom_call.1} parent=5 // pred_check
        _
      $region38: #{tpu_custom_call.1} parent=5 // pred_check_branch
        %208 = sbr.rel (%p205) target = $region40
      $region39: #{tpu_custom_call.1} parent=5 // pred_region
        %s209 = ssub.s32 %s17, 1
        %s210 = sand.u32 %s30, 1
        %s211 = scalar_lea.sflag [#allocation3], %s210
        %s212 = sand.u32 %s30, 1
        %s213 = smul.addr %s212, 8
        %s214 = scalar_lea.vmem [#allocation2], %s213
        // Predicated region
        $region41: #{tpu_custom_call.1} parent=39 // pred_check
          %p215 = pneg %p43
        $region42: #{tpu_custom_call.1} parent=39 // pred_check_branch
          %217 = sbr.rel (%p215) target = $region44
        $region43: #{tpu_custom_call.1} parent=39 // pred_region
          %218 = dma.done %s211, 128
        $region44: #{tpu_custom_call.1} parent=39 // pred_fallthru
          _
        %s219 = sand.u32 %s30, 1
        %s220 = scalar_lea.sflag [#allocation3], %s219
        %s221 = sand.u32 %s30, 1
        %s222 = smul.addr %s221, 8
        %s223 = scalar_lea.vmem [#allocation2], %s222
        %p224 = pneg %p43
        %p225 = pneg %p40
        %p226 = pneg %p64
        %p227 = pneg %p61
        %p228 = pneg %p85
        %p229 = pneg %p82
        %p230 = pneg %p106
        %p231 = pneg %p103
        %p232 = pneg %p127
        %p233 = pneg %p124
        %p234 = pneg %p153
        %p235 = pneg %p150
        %s236 = sand.u32 %s140, 1
        %s237 = scalar_lea.sflag [#allocation4], %s236
        %s238 = sand.u32 %s140, 1
        %s239 = smul.addr %s238, 8
        %s240 = scalar_lea.vmem [#allocation5], %s239
        %v241 = vld [vmem:[%s214] sm:$0xff]
        %v243 = vcombine.high %v241, %v241
        %vm245 = vcmask 1043456
        %v246 = vsel %vm245, %v241, -inf
        %v247 = vsel %vm245, %v243, -inf
        %v248 = vmax.f32 %v246, %v247
        %249 = vmax.xlane.f32.xlu0 %v248
        %v250 = vpop.xlane.xlu0 %249
        %v251 = vsel %vm245, %v241, 0.0
        %v252 = vsel %vm245, %v243, 0.0
        %v253 = vadd.f32 %v251, %v252
        %254 = vadd.xlane.f32.xlu0 %v253
        %v255 = vpop.xlane.xlu0 %254
        %v256 = vmul.f32 %v255, 0.00390625
        %vm257 = vcmask 7168
        %v258 = vsel %vm257, %v250, %v256
        %v259 = vld [vmem:[%s1] sm:$0x3]
        %260 = vxpose.xlu0.b32.start [1/16] %v258, 128
        %261 = vxpose.xlu0.b32.cont [2/16] 0.0, 128
        %262 = vxpose.xlu0.b32.cont [3/16] 0.0, 128
        %263 = vxpose.xlu0.b32.cont [4/16] 0.0, 128
        %264 = vxpose.xlu0.b32.cont [5/16] 0.0, 128
        %265 = vxpose.xlu0.b32.cont [6/16] 0.0, 128
        %266 = vxpose.xlu0.b32.cont [7/16] 0.0, 128
        %267 = vxpose.xlu0.b32.cont [8/16] 0.0, 128
        %268 = vxpose.xlu0.b32.cont [9/16] 0.0, 128
        %269 = vxpose.xlu0.b32.cont [10/16] 0.0, 128
        %270 = vxpose.xlu0.b32.cont [11/16] 0.0, 128
        %271 = vxpose.xlu0.b32.cont [12/16] 0.0, 128
        %272 = vxpose.xlu0.b32.cont [13/16] 0.0, 128
        %273 = vxpose.xlu0.b32.cont [14/16] 0.0, 128
        %274 = vxpose.xlu0.b32.cont [15/16] 0.0, 128
        %275 = vxpose.xlu0.b32.end [16/16] 0.0, 128
        %v276 = vpop.trf.xlu0
        %v277 = vpop.trf.xlu0
        %v278 = vpop.trf.xlu0
        %v279 = vpop.trf.xlu0
        %v280 = vpop.trf.xlu0
        %v281 = vpop.trf.xlu0
        %v282 = vpop.trf.xlu0
        %v283 = vpop.trf.xlu0
        %v284 = vpop.trf.xlu0
        %v285 = vpop.trf.xlu0
        %v286 = vpop.trf.xlu0
        %v287 = vpop.trf.xlu0
        %v288 = vpop.trf.xlu0
        %v289 = vpop.trf.xlu0
        %v290 = vpop.trf.xlu0
        %v291 = vpop.trf.xlu0
        %vm292 = vcmask 31744
        %v294 = vsel %vm292, %v276, 0
        %v297 = vsel %vm292, %v259, 0
        %299 = vmatprep.subr.mxu0 0.0
        %300 = vmatpush1.xpose.msra.mxu0 0.0
        %301 = vmatprep.subr.mxu0 0.0
        %302 = vmatpush1.xpose.msra.mxu0 0.0
        %303 = vmatprep.subr.mxu0 0.0
        %304 = vmatpush1.xpose.msra.mxu0 0.0
        %305 = vmatprep.subr.mxu0 0.0
        %306 = vmatpush1.xpose.msra.mxu0 0.0
        %307 = vmatprep.subr.mxu0 0.0
        %308 = vmatpush1.xpose.msra.mxu0 0.0
        %309 = vmatprep.subr.mxu0 0.0
        %310 = vmatpush1.xpose.msra.mxu0 0.0
        %311 = vmatprep.subr.mxu0 0.0
        %312 = vmatpush1.xpose.msra.mxu0 0.0
        %313 = vmatprep.subr.mxu0 0.0
        %314 = vmatpush1.xpose.msra.mxu0 0.0
        %315 = vmatprep.subr.mxu0 0.0
        %316 = vmatpush1.xpose.msra.mxu0 0.0
        %317 = vmatprep.subr.mxu0 0.0
        %318 = vmatpush1.xpose.msra.mxu0 0.0
        %319 = vmatprep.subr.mxu0 0.0
        %320 = vmatpush1.xpose.msra.mxu0 0.0
        %321 = vmatprep.subr.mxu0 0.0
        %322 = vmatpush1.xpose.msra.mxu0 0.0
        %323 = vmatprep.subr.mxu0 0.0
        %324 = vmatpush1.xpose.msra.mxu0 0.0
        %325 = vmatprep.subr.mxu0 0.0
        %326 = vmatpush1.xpose.msra.mxu0 0.0
        %327 = vmatprep.subr.mxu0 0.0
        %328 = vmatpush1.xpose.msra.mxu0 0.0
        %329 = vmatprep.subr.mxu0 0.0
        %330 = vmatpush1.xpose.msra.mxu0 %v297
        %331 = vmatprep.subr.mxu0 0.0
        %332 = vmatpush2.xpose.msra.mxu0 0.0
        %333 = vmatprep.subr.mxu0 0.0
        %334 = vmatpush2.xpose.msra.mxu0 0.0
        %335 = vmatprep.subr.mxu0 0.0
        %336 = vmatpush2.xpose.msra.mxu0 0.0
        %337 = vmatprep.subr.mxu0 0.0
        %338 = vmatpush2.xpose.msra.mxu0 0.0
        %339 = vmatprep.subr.mxu0 0.0
        %340 = vmatpush2.xpose.msra.mxu0 0.0
        %341 = vmatprep.subr.mxu0 0.0
        %342 = vmatpush2.xpose.msra.mxu0 0.0
        %343 = vmatprep.subr.mxu0 0.0
        %344 = vmatpush2.xpose.msra.mxu0 0.0
        %345 = vmatprep.subr.mxu0 0.0
        %346 = vmatpush2.xpose.msra.mxu0 0.0
        %347 = vmatprep.subr.mxu0 0.0
        %348 = vmatpush2.xpose.msra.mxu0 0.0
        %349 = vmatprep.subr.mxu0 0.0
        %350 = vmatpush2.xpose.msra.mxu0 0.0
        %351 = vmatprep.subr.mxu0 0.0
        %352 = vmatpush2.xpose.msra.mxu0 0.0
        %353 = vmatprep.subr.mxu0 0.0
        %354 = vmatpush2.xpose.msra.mxu0 0.0
        %355 = vmatprep.subr.mxu0 0.0
        %356 = vmatpush2.xpose.msra.mxu0 0.0
        %357 = vmatprep.subr.mxu0 0.0
        %358 = vmatpush2.xpose.msra.mxu0 0.0
        %359 = vmatprep.subr.mxu0 0.0
        %360 = vmatpush2.xpose.msra.mxu0 0.0
        %361 = vmatprep.subr.mxu0 0.0
        %362 = vmatpush2.xpose.msra.mxu0 0.0
        %363 = vmatprep.mubr.f32.mxu0 0.0
        %364 = vmatmul.mubr.f32.gmra.mxu0 %v294
        %v365 = vpop.f32.mrf.mxu0
        %v366 = vadd.f32 0.0, %v365
        %v367 = vpop.f32.mrf.mxu0
        %368 = vdwg.mxu0
        %369 = vxpose.xlu0.b32.start [1/16] %v366, 128
        %370 = vxpose.xlu0.b32.cont [2/16] 0.0, 128
        %371 = vxpose.xlu0.b32.cont [3/16] 0.0, 128
        %372 = vxpose.xlu0.b32.cont [4/16] 0.0, 128
        %373 = vxpose.xlu0.b32.cont [5/16] 0.0, 128
        %374 = vxpose.xlu0.b32.cont [6/16] 0.0, 128
        %375 = vxpose.xlu0.b32.cont [7/16] 0.0, 128
        %376 = vxpose.xlu0.b32.cont [8/16] 0.0, 128
        %377 = vxpose.xlu0.b32.cont [9/16] 0.0, 128
        %378 = vxpose.xlu0.b32.cont [10/16] 0.0, 128
        %379 = vxpose.xlu0.b32.cont [11/16] 0.0, 128
        %380 = vxpose.xlu0.b32.cont [12/16] 0.0, 128
        %381 = vxpose.xlu0.b32.cont [13/16] 0.0, 128
        %382 = vxpose.xlu0.b32.cont [14/16] 0.0, 128
        %383 = vxpose.xlu0.b32.cont [15/16] 0.0, 128
        %384 = vxpose.xlu0.b32.end [16/16] 0.0, 128
        %v385 = vpop.trf.xlu0
        %v386 = vpop.trf.xlu0
        %v387 = vpop.trf.xlu0
        %v388 = vpop.trf.xlu0
        %v389 = vpop.trf.xlu0
        %v390 = vpop.trf.xlu0
        %v391 = vpop.trf.xlu0
        %v392 = vpop.trf.xlu0
        %v393 = vpop.trf.xlu0
        %v394 = vpop.trf.xlu0
        %v395 = vpop.trf.xlu0
        %v396 = vpop.trf.xlu0
        %v397 = vpop.trf.xlu0
        %v398 = vpop.trf.xlu0
        %v399 = vpop.trf.xlu0
        %v400 = vpop.trf.xlu0
        %v401 = vld [vmem:[%s2] sm:$0x3]
        %403 = vset.pattern.permute.xlu0 0
        %404 = vperm.xlu0 %403, %v401
        %v405 = vpop.permute.xlu0 %404
        %v407 = vadd.f32 %v385, %v405
        %v408 = vmax.f32 %v407, 0.0
        %v409 = vld [vmem:[%s3] sm:$0xf]
        %410 = vxpose.xlu0.b32.start [1/16] %v408, 128
        %411 = vxpose.xlu0.b32.cont [2/16] 0.0, 128
        %412 = vxpose.xlu0.b32.cont [3/16] 0.0, 128
        %413 = vxpose.xlu0.b32.cont [4/16] 0.0, 128
        %414 = vxpose.xlu0.b32.cont [5/16] 0.0, 128
        %415 = vxpose.xlu0.b32.cont [6/16] 0.0, 128
        %416 = vxpose.xlu0.b32.cont [7/16] 0.0, 128
        %417 = vxpose.xlu0.b32.cont [8/16] 0.0, 128
        %418 = vxpose.xlu0.b32.cont [9/16] 0.0, 128
        %419 = vxpose.xlu0.b32.cont [10/16] 0.0, 128
        %420 = vxpose.xlu0.b32.cont [11/16] 0.0, 128
        %421 = vxpose.xlu0.b32.cont [12/16] 0.0, 128
        %422 = vxpose.xlu0.b32.cont [13/16] 0.0, 128
        %423 = vxpose.xlu0.b32.cont [14/16] 0.0, 128
        %424 = vxpose.xlu0.b32.cont [15/16] 0.0, 128
        %425 = vxpose.xlu0.b32.end [16/16] 0.0, 128
        %v426 = vpop.trf.xlu0
        %v427 = vpop.trf.xlu0
        %v428 = vpop.trf.xlu0
        %v429 = vpop.trf.xlu0
        %v430 = vpop.trf.xlu0
        %v431 = vpop.trf.xlu0
        %v432 = vpop.trf.xlu0
        %v433 = vpop.trf.xlu0
        %v434 = vpop.trf.xlu0
        %v435 = vpop.trf.xlu0
        %v436 = vpop.trf.xlu0
        %v437 = vpop.trf.xlu0
        %v438 = vpop.trf.xlu0
        %v439 = vpop.trf.xlu0
        %v440 = vpop.trf.xlu0
        %v441 = vpop.trf.xlu0
        %vm442 = vcmask 15360
        %v444 = vsel %vm442, %v426, 0
        %v447 = vsel %vm442, %v409, 0
        %449 = vmatprep.subr.mxu0 0.0
        %450 = vmatpush1.xpose.msra.mxu0 0.0
        %451 = vmatprep.subr.mxu0 0.0
        %452 = vmatpush1.xpose.msra.mxu0 0.0
        %453 = vmatprep.subr.mxu0 0.0
        %454 = vmatpush1.xpose.msra.mxu0 0.0
        %455 = vmatprep.subr.mxu0 0.0
        %456 = vmatpush1.xpose.msra.mxu0 0.0
        %457 = vmatprep.subr.mxu0 0.0
        %458 = vmatpush1.xpose.msra.mxu0 0.0
        %459 = vmatprep.subr.mxu0 0.0
        %460 = vmatpush1.xpose.msra.mxu0 0.0
        %461 = vmatprep.subr.mxu0 0.0
        %462 = vmatpush1.xpose.msra.mxu0 0.0
        %463 = vmatprep.subr.mxu0 0.0
        %464 = vmatpush1.xpose.msra.mxu0 0.0
        %465 = vmatprep.subr.mxu0 0.0
        %466 = vmatpush1.xpose.msra.mxu0 0.0
        %467 = vmatprep.subr.mxu0 0.0
        %468 = vmatpush1.xpose.msra.mxu0 0.0
        %469 = vmatprep.subr.mxu0 0.0
        %470 = vmatpush1.xpose.msra.mxu0 0.0
        %471 = vmatprep.subr.mxu0 0.0
        %472 = vmatpush1.xpose.msra.mxu0 0.0
        %473 = vmatprep.subr.mxu0 0.0
        %474 = vmatpush1.xpose.msra.mxu0 0.0
        %475 = vmatprep.subr.mxu0 0.0
        %476 = vmatpush1.xpose.msra.mxu0 0.0
        %477 = vmatprep.subr.mxu0 0.0
        %478 = vmatpush1.xpose.msra.mxu0 0.0
        %479 = vmatprep.subr.mxu0 0.0
        %480 = vmatpush1.xpose.msra.mxu0 %v447
        %481 = vmatprep.subr.mxu0 0.0
        %482 = vmatpush2.xpose.msra.mxu0 0.0
        %483 = vmatprep.subr.mxu0 0.0
        %484 = vmatpush2.xpose.msra.mxu0 0.0
        %485 = vmatprep.subr.mxu0 0.0
        %486 = vmatpush2.xpose.msra.mxu0 0.0
        %487 = vmatprep.subr.mxu0 0.0
        %488 = vmatpush2.xpose.msra.mxu0 0.0
        %489 = vmatprep.subr.mxu0 0.0
        %490 = vmatpush2.xpose.msra.mxu0 0.0
        %491 = vmatprep.subr.mxu0 0.0
        %492 = vmatpush2.xpose.msra.mxu0 0.0
        %493 = vmatprep.subr.mxu0 0.0
        %494 = vmatpush2.xpose.msra.mxu0 0.0
        %495 = vmatprep.subr.mxu0 0.0
        %496 = vmatpush2.xpose.msra.mxu0 0.0
        %497 = vmatprep.subr.mxu0 0.0
        %498 = vmatpush2.xpose.msra.mxu0 0.0
        %499 = vmatprep.subr.mxu0 0.0
        %500 = vmatpush2.xpose.msra.mxu0 0.0
        %501 = vmatprep.subr.mxu0 0.0
        %502 = vmatpush2.xpose.msra.mxu0 0.0
        %503 = vmatprep.subr.mxu0 0.0
        %504 = vmatpush2.xpose.msra.mxu0 0.0
        %505 = vmatprep.subr.mxu0 0.0
        %506 = vmatpush2.xpose.msra.mxu0 0.0
        %507 = vmatprep.subr.mxu0 0.0
        %508 = vmatpush2.xpose.msra.mxu0 0.0
        %509 = vmatprep.subr.mxu0 0.0
        %510 = vmatpush2.xpose.msra.mxu0 0.0
        %511 = vmatprep.subr.mxu0 0.0
        %512 = vmatpush2.xpose.msra.mxu0 0.0
        %513 = vmatprep.mubr.f32.mxu0 0.0
        %514 = vmatmul.mubr.f32.gmra.mxu0 %v444
        %v515 = vpop.f32.mrf.mxu0
        %v516 = vadd.f32 0.0, %v515
        %v517 = vpop.f32.mrf.mxu0
        %518 = vdwg.mxu0
        %519 = vxpose.xlu0.b32.start [1/16] %v516, 128
        %520 = vxpose.xlu0.b32.cont [2/16] 0.0, 128
        %521 = vxpose.xlu0.b32.cont [3/16] 0.0, 128
        %522 = vxpose.xlu0.b32.cont [4/16] 0.0, 128
        %523 = vxpose.xlu0.b32.cont [5/16] 0.0, 128
        %524 = vxpose.xlu0.b32.cont [6/16] 0.0, 128
        %525 = vxpose.xlu0.b32.cont [7/16] 0.0, 128
        %526 = vxpose.xlu0.b32.cont [8/16] 0.0, 128
        %527 = vxpose.xlu0.b32.cont [9/16] 0.0, 128
        %528 = vxpose.xlu0.b32.cont [10/16] 0.0, 128
        %529 = vxpose.xlu0.b32.cont [11/16] 0.0, 128
        %530 = vxpose.xlu0.b32.cont [12/16] 0.0, 128
        %531 = vxpose.xlu0.b32.cont [13/16] 0.0, 128
        %532 = vxpose.xlu0.b32.cont [14/16] 0.0, 128
        %533 = vxpose.xlu0.b32.cont [15/16] 0.0, 128
        %534 = vxpose.xlu0.b32.end [16/16] 0.0, 128
        %v535 = vpop.trf.xlu0
        %v536 = vpop.trf.xlu0
        %v537 = vpop.trf.xlu0
        %v538 = vpop.trf.xlu0
        %v539 = vpop.trf.xlu0
        %v540 = vpop.trf.xlu0
        %v541 = vpop.trf.xlu0
        %v542 = vpop.trf.xlu0
        %v543 = vpop.trf.xlu0
        %v544 = vpop.trf.xlu0
        %v545 = vpop.trf.xlu0
        %v546 = vpop.trf.xlu0
        %v547 = vpop.trf.xlu0
        %v548 = vpop.trf.xlu0
        %v549 = vpop.trf.xlu0
        %v550 = vpop.trf.xlu0
        %v551 = vld [vmem:[%s4] sm:$0xf]
        %553 = vset.pattern.permute.xlu0 0
        %554 = vperm.xlu0 %553, %v551
        %v555 = vpop.permute.xlu0 %554
        %v557 = vadd.f32 %v535, %v555
        %559 = vrot.lane.b32.xlu0 %v557, 127
        %v560 = vpop.permute.xlu0 %559
        %v562 = vadd.f32 %v557, %v560
        %v563 = vxor.u32 %v562, 2147483648
        %v564 = vmul.f32 %v563, 1.442695
        %v565 = vpow.pop %v564
        %v566 = vadd.f32 %v565, 1.0
        %v567 = vrcp.pop %v566
        %v568 = vmul.f32 1.0, %v567
        %570 = vset.pattern.permute.xlu0 0
        %571 = vperm.xlu0 %570, %v568
        %v572 = vpop.permute.xlu0 %571
        %v574 = vunpack.c.l.s4 839922192
        %v575 = vunpack.c.0.s8 %v574
        %v576 = vlaneseq
        %v577 = vshrl.u32 %v576, 7
        %v578 = vsub.s32 %v575, %v577
        %v579 = vrot.slane %v572, %v578
        %v581 = vmul.f32 %v241, %v579
        %582 = vst [vmem:[%s240] sm:$0xff] %v581
        %s583 = sand.u32 %s140, 1
        %s584 = scalar_lea.sflag [#allocation4], %s583
        %s585 = sand.u32 %s140, 1
        %s586 = smul.addr %s585, 8
        %s587 = scalar_lea.vmem [#allocation5], %s586
        // Predicated region
        $region45: #{tpu_custom_call.1} parent=39 // pred_check
          %p588 = pneg %p150
        $region46: #{tpu_custom_call.1} parent=39 // pred_check_branch
          %590 = sbr.rel (%p588) target = $region48
        $region47: #{tpu_custom_call.1} parent=39 // pred_region
          %s592 = ssub.s32 128, 128
          %593 = vsyncadd %s584, %s592
          %s594 = smul.addr %s22, 2
          %s595 = smul.addr %s594, 64
          %s596 = scalar_lea.hbm %s5, %s595
          %s598 = sshll.u32 %s587, 4
          %s599 = int_to_ptr.vmem [resolvable:$true] %s598
          %601 = dma.vmem_to_hbm [thread:$0]  %s599, 128, %s596, %s584
        $region48: #{tpu_custom_call.1} parent=39 // pred_fallthru
          _
      $region40: #{tpu_custom_call.1} parent=5 // pred_fallthru
        _
      %p602 = scmp.le.s32.totalorder 2, %s17
      // Predicated region
      $region49: #{tpu_custom_call.1} parent=5 // pred_check
        %p603 = pneg %p602
      $region50: #{tpu_custom_call.1} parent=5 // pred_check_branch
        %605 = sbr.rel (%p603) target = $region52
      $region51: #{tpu_custom_call.1} parent=5 // pred_region
        %s606 = ssub.s32 %s17, 2
        // Predicated region
        $region53: #{tpu_custom_call.1} parent=51 // pred_check
          %p607 = pneg %p156
        $region54: #{tpu_custom_call.1} parent=51 // pred_check_branch
          %609 = sbr.rel (%p607) target = $region56
        $region55: #{tpu_custom_call.1} parent=51 // pred_region
          %s610 = sand.u32 %s141, 1
          %s611 = scalar_lea.sflag [#allocation4], %s610
          %s612 = sand.u32 %s141, 1
          %s613 = smul.addr %s612, 8
          %s614 = scalar_lea.vmem [#allocation5], %s613
          %615 = dma.done %s611, 128
        $region56: #{tpu_custom_call.1} parent=51 // pred_fallthru
          _
      $region52: #{tpu_custom_call.1} parent=5 // pred_fallthru
        _
    $region6: #{tpu_custom_call.1} parent=1 // loop_footer
      %s21 = sadd.s32 1, %s17
    $region7: #{tpu_custom_call.1} parent=1 // loop_footer_branch
      %16 = sbr.rel target = $region3
    $region8: #{tpu_custom_call.1} parent=1 // loop_exit
      _
    %616 = vsyncpa [#allocation3], 1
    %s617 = scalar_lea.sflag [#allocation3], 1
    %618 = vsyncpa %s617, 1
    %619 = vsyncpa [#allocation4], 1
    %s620 = scalar_lea.sflag [#allocation4], 1
    %621 = vsyncpa %s620, 1

</llo_original>
